<compile_context>
chip_gen: v5e
topology: v5e:2x2
jax: 0.10.0
libtpu: 0.0.40
codegen_flags: <defaults>
</compile_context>

<pallas_src>
import functools

import jax
import jax.numpy as jnp
from jax.experimental import pallas as pl
from jax.experimental.pallas import tpu as pltpu

N_EMBD = 64


def _head_kernel(xq_ref, xkv_ref, wq_ref, wk_ref, wv_ref, o_ref,
                 q_scr, m_scr, l_scr, acc_scr, *, approx_reciprocal):
    """One (batch-block, q-tile, kv-tile) step of flash-style causal attention.

    Layout: scores are computed transposed, (bb, tk, tq), so the lane axis is the query
    tile; m / l / acc and the output block (bb, H, tq) are all lane-dense.
    """
    qi = pl.program_id(1)
    ki = pl.program_id(2)
    n_kv = pl.num_programs(2)

    tq = q_scr.shape[1]
    tk = xkv_ref.shape[1]
    q_start = qi * tq
    k_start = ki * tk

    @pl.when(ki == 0)
    def _init():
        # Query projection for this (batch, q-tile); reused across all kv tiles.
        q = jax.lax.dot_general(
            xq_ref[...], wq_ref[...],
            dimension_numbers=(((2,), (0,)), ((), ())),
            preferred_element_type=jnp.float32)          # (bb, tq, H), scale already in Wq
        q_scr[...] = q.astype(q_scr.dtype)
        m_scr[...] = jnp.full_like(m_scr, -jnp.inf)
        l_scr[...] = jnp.zeros_like(l_scr)
        acc_scr[...] = jnp.zeros_like(acc_scr)

    # Skip kv tiles strictly above the causal diagonal (pure compute skip; DMA still streams).
    @pl.when(k_start <= q_start + (tq - 1))
    def _compute():
        xkv = xkv_ref[...]                               # (bb, tk, C)
        k = jax.lax.dot_general(
            xkv, wk_ref[...], (((2,), (0,)), ((), ())),
            preferred_element_type=jnp.float32).astype(xkv.dtype)   # (bb, tk, H)
        v = jax.lax.dot_general(
            xkv, wv_ref[...], (((2,), (0,)), ((), ())),
            preferred_element_type=jnp.float32).astype(xkv.dtype)   # (bb, tk, H)
        q = q_scr[...]                                   # (bb, tq, H)

        # Transposed scores: contract the head dims directly (no k transpose on the XLU).
        s = jax.lax.dot_general(
            k, q, (((2,), (2,)), ((0,), (0,))),
            preferred_element_type=jnp.float32)          # (bb, tk, tq)

        # Per-tile causal mask from grid offsets; never a (T, T) mask.
        key_idx = jax.lax.broadcasted_iota(jnp.int32, (tk, tq), 0) + k_start
        qry_idx = jax.lax.broadcasted_iota(jnp.int32, (tk, tq), 1) + q_start
        s = jnp.where((key_idx <= qry_idx)[None, :, :], s, -jnp.inf)

        # Online softmax update; all statistics are lane-dense along the query tile.
        m_prev = m_scr[...]                              # (bb, 1, tq)
        m_new = jnp.maximum(m_prev, jnp.max(s, axis=1, keepdims=True))
        alpha = jnp.exp(m_prev - m_new)
        p = jnp.exp(s - m_new)                           # (bb, tk, tq), f32
        l_scr[...] = alpha * l_scr[...] + jnp.sum(p, axis=1, keepdims=True)
        acc_scr[...] = alpha * acc_scr[...] + jax.lax.dot_general(
            v, p.astype(v.dtype), (((1,), (1,)), ((0,), (0,))),
            preferred_element_type=jnp.float32)          # (bb, H, tq)
        m_scr[...] = m_new

    @pl.when(ki == n_kv - 1)
    def _finalize():
        # Diagonal is always unmasked -> every row has l >= 1, no divide-by-zero / NaN rows.
        inv_l = pl.reciprocal(l_scr[...], approx=approx_reciprocal)
        o_ref[...] = (acc_scr[...] * inv_l).astype(o_ref.dtype)


def _pick_tile(n, preferred):
    """Largest tile <= preferred that divides n and is a multiple of 128 (keeps the
    transposed output block lane-dense and BlockSpec-legal); falls back to the full
    extent (untiled) otherwise."""
    for t in (256, 128):
        if t <= preferred and t <= n and n % t == 0:
            return t
    return n


def _vmem_estimate_bytes(bb, tq, tk, C, H, in_item, out_item):
    f32 = 4
    est = 2 * bb * tq * C * in_item          # xq block, double-buffered
    est += 2 * bb * tk * C * in_item         # xkv block, double-buffered
    est += 2 * 3 * C * H * in_item           # weights
    est += 2 * bb * H * tq * out_item        # output block
    est += bb * tq * H * in_item             # q scratch
    est += 2 * bb * tq * f32                 # m, l scratch
    est += bb * H * tq * f32                 # acc scratch
    est += 3 * bb * tk * tq * f32            # s / p / mask intermediates
    est += 2 * bb * tk * H * f32             # k, v projection results
    return est


def head_forward(x, w_key, w_query, w_value, *,
                 compute_dtype=jnp.bfloat16,
                 batch_block=None, q_block=256, kv_block=256,
                 approx_reciprocal=True,
                 vmem_budget_bytes=20 * 2 ** 20):
    """x: (B, T, C); w_*: (C, head_size) -> (B, T, head_size).

    compute_dtype:     MXU operand dtype (bf16 default on all generations incl. v7x);
                       accumulation, softmax and the output stay in f32/x.dtype.
    batch_block:       batch elements per grid step (auto: largest divisor of B within the
                       VMEM budget, keeping >=2 parallel steps for v7x's two TensorCores).
    q_block/kv_block:  preferred tile sizes along the sequence (clamped to legal divisors).
    approx_reciprocal: softmax denominator via EUP approx reciprocal (set False for
                       bit-closer results, e.g. when comparing against training code).
    """
    B, T, C = x.shape
    H = w_key.shape[1]
    out_dtype = x.dtype
    cdt = jnp.dtype(compute_dtype) if compute_dtype is not None else jnp.dtype(out_dtype)

    # Fold 1/sqrt(H) into the query weight (exact scaling for power-of-two H, e.g. 16 -> 0.25).
    scale = float(H) ** -0.5
    wq = (w_query.astype(jnp.float32) * scale).astype(cdt)
    wk = w_key.astype(cdt)
    wv = w_value.astype(cdt)
    xc = x.astype(cdt)

    tq = _pick_tile(T, q_block)
    tk = _pick_tile(T, kv_block)

    in_item = cdt.itemsize
    out_item = jnp.dtype(out_dtype).itemsize
    if batch_block is None:
        bb = 1
        for d in range(1, B + 1):
            if B % d == 0 and _vmem_estimate_bytes(d, tq, tk, C, H, in_item, out_item) <= vmem_budget_bytes:
                bb = d
        # Keep at least 2 "parallel" grid steps so both v7x TensorCores get work;
        # on single-TC v5e/v6e the extra step costs only ~0.35us.
        if (B // bb) * (T // tq) < 2 and bb > 1:
            smaller = [d for d in range(1, bb) if B % d == 0]
            if smaller:
                bb = smaller[-1]
    else:
        bb = batch_block
    assert B % bb == 0, "batch_block must divide B"
    assert T % tq == 0 and T % tk == 0

    grid = (B // bb, T // tq, T // tk)

    grid_spec = pltpu.PrefetchScalarGridSpec(
        num_scalar_prefetch=0,
        grid=grid,
        in_specs=[
            pl.BlockSpec((bb, tq, C), lambda b, qi, ki: (b, qi, 0)),   # x for queries
            pl.BlockSpec((bb, tk, C), lambda b, qi, ki: (b, ki, 0)),   # x for keys/values
            pl.BlockSpec((C, H), lambda b, qi, ki: (0, 0)),            # Wq (pre-scaled)
            pl.BlockSpec((C, H), lambda b, qi, ki: (0, 0)),            # Wk
            pl.BlockSpec((C, H), lambda b, qi, ki: (0, 0)),            # Wv
        ],
        out_specs=pl.BlockSpec((bb, H, tq), lambda b, qi, ki: (b, 0, qi)),
        scratch_shapes=[
            pltpu.VMEM((bb, tq, H), cdt),            # cached query tile
            pltpu.VMEM((bb, 1, tq), jnp.float32),    # running max m
            pltpu.VMEM((bb, 1, tq), jnp.float32),    # running sum l
            pltpu.VMEM((bb, H, tq), jnp.float32),    # output accumulator
        ],
    )

    est = _vmem_estimate_bytes(bb, tq, tk, C, H, in_item, out_item)
    vmem_limit = int(min(60 * 2 ** 20, max(32 * 2 ** 20, 2 * est)))
    compiler_params = pltpu.CompilerParams(
        dimension_semantics=("parallel", "parallel", "arbitrary"),
        vmem_limit_bytes=vmem_limit,
    )

    cost = pl.CostEstimate(
        flops=2 * B * T * C * 3 * H + 4 * B * T * T * H,   # projections + scores + PV (dense bound)
        transcendentals=B * T * T,
        bytes_accessed=2 * B * T * C * in_item + 3 * C * H * in_item + B * T * H * out_item,
    )

    kernel = functools.partial(_head_kernel, approx_reciprocal=approx_reciprocal)
    out_t = pl.pallas_call(
        kernel,
        out_shape=jax.ShapeDtypeStruct((B, H, T), out_dtype),
        grid_spec=grid_spec,
        compiler_params=compiler_params,
        cost_estimate=cost,
    )(xc, xc, wq, wk, wv)

    # Lane-dense (B, H, T) kernel output -> module layout (B, T, H); layout plumbing only.
    return jnp.swapaxes(out_t, 1, 2)


def reference_forward(x, w_key, w_query, w_value):
    """Plain-JAX reference mirroring the PyTorch forward (eval mode)."""
    B, T, C = x.shape
    k = x @ w_key
    q = x @ w_query
    v = x @ w_value
    wei = (q @ jnp.swapaxes(k, -2, -1)) * (k.shape[-1] ** -0.5)
    mask = jnp.tril(jnp.ones((T, T), dtype=bool))
    wei = jnp.where(mask, wei, -jnp.inf)
    wei = jax.nn.softmax(wei, axis=-1)
    return wei @ v


if __name__ == "__main__":
    head_size = 16

    key = jax.random.PRNGKey(0)
    kx, kk, kq, kv, kx2 = jax.random.split(key, 5)

    # nn.Linear(n_embd, head_size, bias=False) weight is (head_size, n_embd); we store the
    # transposed (n_embd, head_size) matrix, init U(-1/sqrt(C), 1/sqrt(C)).
    bound = 1.0 / (N_EMBD ** 0.5)
    w_key = jax.random.uniform(kk, (N_EMBD, head_size), jnp.float32, -bound, bound)
    w_query = jax.random.uniform(kq, (N_EMBD, head_size), jnp.float32, -bound, bound)
    w_value = jax.random.uniform(kv, (N_EMBD, head_size), jnp.float32, -bound, bound)

    # 1) Small shape (B=2, T=8): single-tile path, f32 operands, exact reciprocal.
    x_small = jax.random.normal(kx, (2, 8, N_EMBD), dtype=jnp.float32)
    with jax.default_matmul_precision("highest"):
        ref_small = reference_forward(x_small, w_key, w_query, w_value)
    out_f32 = jax.block_until_ready(
        head_forward(x_small, w_key, w_query, w_value,
                     compute_dtype=jnp.float32, approx_reciprocal=False))
    assert out_f32.shape == (2, 8, head_size)
    assert jnp.allclose(out_f32, ref_small, atol=5e-3, rtol=5e-3), "f32 mismatch vs reference"

    # 2) Same shape, default path: bf16 MXU operands + EUP approx reciprocal.
    out_bf16 = jax.block_until_ready(head_forward(x_small, w_key, w_query, w_value))
    assert jnp.allclose(out_bf16, ref_small, atol=5e-2, rtol=5e-2), "bf16 mismatch vs reference"

    # 3) block_size-length sequence exercising the tiled flash path: 2x2 q/kv tiles,
    #    causal tile skipping, online softmax accumulation across kv tiles.
    x_seq = jax.random.normal(kx2, (2, 256, N_EMBD), dtype=jnp.float32)
    with jax.default_matmul_precision("highest"):
        ref_seq = reference_forward(x_seq, w_key, w_query, w_value)
    out_seq = jax.block_until_ready(
        head_forward(x_seq, w_key, w_query, w_value,
                     compute_dtype=jnp.float32, approx_reciprocal=False,
                     q_block=128, kv_block=128))
    assert jnp.allclose(out_seq, ref_seq, atol=5e-3, rtol=5e-3), "tiled-path mismatch vs reference"

    print("KERNEL_OK")
</pallas_src>

<mosaic_0001>
module attributes {stable_mosaic.version = 11 : i64} {
  func.func @_head_kernel(%arg0: i32, %arg1: i32, %arg2: i32, %arg3: memref<1x8x64xf32, #tpu.memory_space<vmem>>, %arg4: memref<1x8x64xf32, #tpu.memory_space<vmem>>, %arg5: memref<64x16xf32, #tpu.memory_space<vmem>>, %arg6: memref<64x16xf32, #tpu.memory_space<vmem>>, %arg7: memref<64x16xf32, #tpu.memory_space<vmem>>, %arg8: memref<1x16x8xf32, #tpu.memory_space<vmem>>, %arg9: memref<1x8x16xf32, #tpu.memory_space<vmem>>, %arg10: memref<1x1x8xf32, #tpu.memory_space<vmem>>, %arg11: memref<1x1x8xf32, #tpu.memory_space<vmem>>, %arg12: memref<1x16x8xf32, #tpu.memory_space<vmem>>) attributes {dimension_semantics = [#tpu.dimension_semantics<parallel>, #tpu.dimension_semantics<parallel>, #tpu.dimension_semantics<arbitrary>], iteration_bounds = array<i64: 2, 1, 1>, scalar_prefetch = 0 : i64, scratch_operands = 4 : i64, tpu.core_type = #tpu.core_type<tc>, window_params = [{transform_indices = @transform_0, window_bounds = array<i64: 1, 8, 64>}, {transform_indices = @transform_1, window_bounds = array<i64: 1, 8, 64>}, {pipeline_mode = #tpu.pipeline_mode<synchronous>, transform_indices = @transform_2, window_bounds = array<i64: 64, 16>}, {pipeline_mode = #tpu.pipeline_mode<synchronous>, transform_indices = @transform_3, window_bounds = array<i64: 64, 16>}, {pipeline_mode = #tpu.pipeline_mode<synchronous>, transform_indices = @transform_4, window_bounds = array<i64: 64, 16>}, {transform_indices = @transform_5, window_bounds = array<i64: 1, 16, 8>}]} {
    %c8_i32 = arith.constant 8 : i32
    %0 = arith.muli %arg1, %c8_i32 : i32
    %c8_i32_0 = arith.constant 8 : i32
    %1 = arith.muli %arg2, %c8_i32_0 : i32
    %c0_i32 = arith.constant 0 : i32
    %2 = arith.cmpi eq, %arg2, %c0_i32 : i32
    %3 = arith.extui %2 : i1 to i32
    %c0_i32_1 = arith.constant 0 : i32
    %4 = arith.cmpi ne, %3, %c0_i32_1 : i32
    scf.if %4 {
      %c0 = arith.constant 0 : index
      %c0_5 = arith.constant 0 : index
      %c0_6 = arith.constant 0 : index
      %12 = vector.load %arg3[%c0, %c0_5, %c0_6] : memref<1x8x64xf32, #tpu.memory_space<vmem>>, vector<1x8x64xf32>
      %c0_7 = arith.constant 0 : index
      %c0_8 = arith.constant 0 : index
      %13 = vector.load %arg5[%c0_7, %c0_8] : memref<64x16xf32, #tpu.memory_space<vmem>>, vector<64x16xf32>
      %cst = arith.constant dense<0.000000e+00> : vector<1x8x16xf32>
      %14 = tpu.matmul %12, %13, %cst {dimension_numbers = #tpu.dot_dimension_numbers<[2], [0], [0, 1], [1], [0, 0, 0, 1, 1, 1], [], []>} : vector<1x8x64xf32>, vector<64x16xf32>, vector<1x8x16xf32> -> vector<1x8x16xf32>
      %c0_9 = arith.constant 0 : index
      %c0_10 = arith.constant 0 : index
      %c0_11 = arith.constant 0 : index
      %15 = vector.load %arg9[%c0_9, %c0_10, %c0_11] : memref<1x8x16xf32, #tpu.memory_space<vmem>>, vector<1x8x16xf32>
      tpu.vector_store %arg9[%c0_9, %c0_10, %c0_11], %14 {strides = array<i32>} : memref<1x8x16xf32, #tpu.memory_space<vmem>>, vector<1x8x16xf32>,
      %cst_12 = arith.constant 0xFF800000 : f32
      %16 = vector.broadcast %cst_12 : f32 to vector<1x1x8xf32>
      %c0_13 = arith.constant 0 : index
      %c0_14 = arith.constant 0 : index
      %c0_15 = arith.constant 0 : index
      %17 = vector.load %arg10[%c0_13, %c0_14, %c0_15] : memref<1x1x8xf32, #tpu.memory_space<vmem>>, vector<1x1x8xf32>
      tpu.vector_store %arg10[%c0_13, %c0_14, %c0_15], %16 {strides = array<i32>} : memref<1x1x8xf32, #tpu.memory_space<vmem>>, vector<1x1x8xf32>,
      %cst_16 = arith.constant 0.000000e+00 : f32
      %18 = vector.broadcast %cst_16 : f32 to vector<1x1x8xf32>
      %c0_17 = arith.constant 0 : index
      %c0_18 = arith.constant 0 : index
      %c0_19 = arith.constant 0 : index
      %19 = vector.load %arg11[%c0_17, %c0_18, %c0_19] : memref<1x1x8xf32, #tpu.memory_space<vmem>>, vector<1x1x8xf32>
      tpu.vector_store %arg11[%c0_17, %c0_18, %c0_19], %18 {strides = array<i32>} : memref<1x1x8xf32, #tpu.memory_space<vmem>>, vector<1x1x8xf32>,
      %cst_20 = arith.constant 0.000000e+00 : f32
      %20 = vector.broadcast %cst_20 : f32 to vector<1x16x8xf32>
      %c0_21 = arith.constant 0 : index
      %c0_22 = arith.constant 0 : index
      %c0_23 = arith.constant 0 : index
      %21 = vector.load %arg12[%c0_21, %c0_22, %c0_23] : memref<1x16x8xf32, #tpu.memory_space<vmem>>, vector<1x16x8xf32>
      tpu.vector_store %arg12[%c0_21, %c0_22, %c0_23], %20 {strides = array<i32>} : memref<1x16x8xf32, #tpu.memory_space<vmem>>, vector<1x16x8xf32>,
    } else {
    }
    %c7_i32 = arith.constant 7 : i32
    %5 = arith.addi %0, %c7_i32 : i32
    %6 = arith.cmpi sle, %1, %5 : i32
    %7 = arith.extui %6 : i1 to i32
    %c0_i32_2 = arith.constant 0 : i32
    %8 = arith.cmpi ne, %7, %c0_i32_2 : i32
    scf.if %8 {
      %c0 = arith.constant 0 : index
      %c0_5 = arith.constant 0 : index
      %c0_6 = arith.constant 0 : index
      %12 = vector.load %arg4[%c0, %c0_5, %c0_6] : memref<1x8x64xf32, #tpu.memory_space<vmem>>, vector<1x8x64xf32>
      %c0_7 = arith.constant 0 : index
      %c0_8 = arith.constant 0 : index
      %13 = vector.load %arg6[%c0_7, %c0_8] : memref<64x16xf32, #tpu.memory_space<vmem>>, vector<64x16xf32>
      %cst = arith.constant dense<0.000000e+00> : vector<1x8x16xf32>
      %14 = tpu.matmul %12, %13, %cst {dimension_numbers = #tpu.dot_dimension_numbers<[2], [0], [0, 1], [1], [0, 0, 0, 1, 1, 1], [], []>} : vector<1x8x64xf32>, vector<64x16xf32>, vector<1x8x16xf32> -> vector<1x8x16xf32>
      %c0_9 = arith.constant 0 : index
      %c0_10 = arith.constant 0 : index
      %15 = vector.load %arg7[%c0_9, %c0_10] : memref<64x16xf32, #tpu.memory_space<vmem>>, vector<64x16xf32>
      %cst_11 = arith.constant dense<0.000000e+00> : vector<1x8x16xf32>
      %16 = tpu.matmul %12, %15, %cst_11 {dimension_numbers = #tpu.dot_dimension_numbers<[2], [0], [0, 1], [1], [0, 0, 0, 1, 1, 1], [], []>} : vector<1x8x64xf32>, vector<64x16xf32>, vector<1x8x16xf32> -> vector<1x8x16xf32>
      %c0_12 = arith.constant 0 : index
      %c0_13 = arith.constant 0 : index
      %c0_14 = arith.constant 0 : index
      %17 = vector.load %arg9[%c0_12, %c0_13, %c0_14] : memref<1x8x16xf32, #tpu.memory_space<vmem>>, vector<1x8x16xf32>
      %cst_15 = arith.constant dense<0.000000e+00> : vector<1x8x8xf32>
      %18 = tpu.matmul %14, %17, %cst_15 {dimension_numbers = #tpu.dot_dimension_numbers<[2], [2], [1], [1], [0, 0, 0, 1, 1, 1], [0], [0]>} : vector<1x8x16xf32>, vector<1x8x16xf32>, vector<1x8x8xf32> -> vector<1x8x8xf32>
      %19 = tpu.iota {dimensions = array<i32: 0>} : vector<8x8xi32>
      %20 = vector.broadcast %1 : i32 to vector<8x8xi32>
      %21 = arith.addi %19, %20 : vector<8x8xi32>
      %22 = tpu.iota {dimensions = array<i32: 1>} : vector<8x8xi32>
      %23 = vector.broadcast %0 : i32 to vector<8x8xi32>
      %24 = arith.addi %22, %23 : vector<8x8xi32>
      %25 = arith.cmpi sle, %21, %24 : vector<8x8xi32>
      %26 = vector.shape_cast %25 : vector<8x8xi1> to vector<1x8x8xi1>
      %cst_16 = arith.constant 0xFF800000 : f32
      %27 = vector.broadcast %cst_16 : f32 to vector<1x8x8xf32>
      %28 = arith.select %26, %18, %27 : vector<1x8x8xi1>, vector<1x8x8xf32>
      %c0_17 = arith.constant 0 : index
      %c0_18 = arith.constant 0 : index
      %c0_19 = arith.constant 0 : index
      %29 = vector.load %arg10[%c0_17, %c0_18, %c0_19] : memref<1x1x8xf32, #tpu.memory_space<vmem>>, vector<1x1x8xf32>
      %cst_20 = arith.constant dense<0xFF800000> : vector<1x8xf32>
      %30 = vector.multi_reduction <maximumf>, %28, %cst_20 [1] : vector<1x8x8xf32> to vector<1x8xf32>
      %31 = vector.shape_cast %30 : vector<1x8xf32> to vector<1x1x8xf32>
      %32 = arith.maximumf %29, %31 : vector<1x1x8xf32>
      %33 = arith.subf %29, %32 : vector<1x1x8xf32>
      %34 = math.exp %33 : vector<1x1x8xf32>
      %35 = vector.broadcast %32 : vector<1x1x8xf32> to vector<1x8x8xf32>
      %36 = arith.subf %28, %35 : vector<1x8x8xf32>
      %37 = math.exp %36 : vector<1x8x8xf32>
      %c0_21 = arith.constant 0 : index
      %c0_22 = arith.constant 0 : index
      %c0_23 = arith.constant 0 : index
      %38 = vector.load %arg11[%c0_21, %c0_22, %c0_23] : memref<1x1x8xf32, #tpu.memory_space<vmem>>, vector<1x1x8xf32>
      %39 = arith.mulf %34, %38 : vector<1x1x8xf32>
      %cst_24 = arith.constant dense<0.000000e+00> : vector<1x8xf32>
      %40 = vector.multi_reduction <add>, %37, %cst_24 [1] : vector<1x8x8xf32> to vector<1x8xf32>
      %41 = vector.shape_cast %40 : vector<1x8xf32> to vector<1x1x8xf32>
      %42 = arith.addf %39, %41 : vector<1x1x8xf32>
      %c0_25 = arith.constant 0 : index
      %c0_26 = arith.constant 0 : index
      %c0_27 = arith.constant 0 : index
      %43 = vector.load %arg11[%c0_25, %c0_26, %c0_27] : memref<1x1x8xf32, #tpu.memory_space<vmem>>, vector<1x1x8xf32>
      tpu.vector_store %arg11[%c0_25, %c0_26, %c0_27], %42 {strides = array<i32>} : memref<1x1x8xf32, #tpu.memory_space<vmem>>, vector<1x1x8xf32>,
      %c0_28 = arith.constant 0 : index
      %c0_29 = arith.constant 0 : index
      %c0_30 = arith.constant 0 : index
      %44 = vector.load %arg12[%c0_28, %c0_29, %c0_30] : memref<1x16x8xf32, #tpu.memory_space<vmem>>, vector<1x16x8xf32>
      %45 = vector.broadcast %34 : vector<1x1x8xf32> to vector<1x16x8xf32>
      %46 = arith.mulf %45, %44 : vector<1x16x8xf32>
      %cst_31 = arith.constant dense<0.000000e+00> : vector<1x16x8xf32>
      %47 = tpu.matmul %16, %37, %cst_31 {dimension_numbers = #tpu.dot_dimension_numbers<[1], [1], [2], [2], [0, 0, 0, 2, 1, 2], [0], [0]>} : vector<1x8x16xf32>, vector<1x8x8xf32>, vector<1x16x8xf32> -> vector<1x16x8xf32>
      %48 = arith.addf %46, %47 : vector<1x16x8xf32>
      %c0_32 = arith.constant 0 : index
      %c0_33 = arith.constant 0 : index
      %c0_34 = arith.constant 0 : index
      %49 = vector.load %arg12[%c0_32, %c0_33, %c0_34] : memref<1x16x8xf32, #tpu.memory_space<vmem>>, vector<1x16x8xf32>
      tpu.vector_store %arg12[%c0_32, %c0_33, %c0_34], %48 {strides = array<i32>} : memref<1x16x8xf32, #tpu.memory_space<vmem>>, vector<1x16x8xf32>,
      %c0_35 = arith.constant 0 : index
      %c0_36 = arith.constant 0 : index
      %c0_37 = arith.constant 0 : index
      %50 = vector.load %arg10[%c0_35, %c0_36, %c0_37] : memref<1x1x8xf32, #tpu.memory_space<vmem>>, vector<1x1x8xf32>
      tpu.vector_store %arg10[%c0_35, %c0_36, %c0_37], %32 {strides = array<i32>} : memref<1x1x8xf32, #tpu.memory_space<vmem>>, vector<1x1x8xf32>,
    } else {
    }
    %c0_i32_3 = arith.constant 0 : i32
    %9 = arith.cmpi eq, %arg2, %c0_i32_3 : i32
    %10 = arith.extui %9 : i1 to i32
    %c0_i32_4 = arith.constant 0 : i32
    %11 = arith.cmpi ne, %10, %c0_i32_4 : i32
    scf.if %11 {
      %c0 = arith.constant 0 : index
      %c0_5 = arith.constant 0 : index
      %c0_6 = arith.constant 0 : index
      %12 = vector.load %arg11[%c0, %c0_5, %c0_6] : memref<1x1x8xf32, #tpu.memory_space<vmem>>, vector<1x1x8xf32>
      %13 = tpu.reciprocal %12 : vector<1x1x8xf32> -> vector<1x1x8xf32>
      %c0_7 = arith.constant 0 : index
      %c0_8 = arith.constant 0 : index
      %c0_9 = arith.constant 0 : index
      %14 = vector.load %arg12[%c0_7, %c0_8, %c0_9] : memref<1x16x8xf32, #tpu.memory_space<vmem>>, vector<1x16x8xf32>
      %15 = vector.broadcast %13 : vector<1x1x8xf32> to vector<1x16x8xf32>
      %16 = arith.mulf %14, %15 : vector<1x16x8xf32>
      %c0_10 = arith.constant 0 : index
      %c0_11 = arith.constant 0 : index
      %c0_12 = arith.constant 0 : index
      %17 = vector.load %arg8[%c0_10, %c0_11, %c0_12] : memref<1x16x8xf32, #tpu.memory_space<vmem>>, vector<1x16x8xf32>
      tpu.vector_store %arg8[%c0_10, %c0_11, %c0_12], %16 {strides = array<i32>} : memref<1x16x8xf32, #tpu.memory_space<vmem>>, vector<1x16x8xf32>,
    } else {
    }
    return
  }
  func.func @transform_0(%arg0: i32, %arg1: i32, %arg2: i32) -> (i32, i32, i32) {
    %c0_i32 = arith.constant 0 : i32
    %c0_i32_0 = arith.constant 0 : i32
    return %arg0, %arg1, %c0_i32 : i32, i32, i32
  }
  func.func @transform_1(%arg0: i32, %arg1: i32, %arg2: i32) -> (i32, i32, i32) {
    %c0_i32 = arith.constant 0 : i32
    %c0_i32_0 = arith.constant 0 : i32
    return %arg0, %arg2, %c0_i32 : i32, i32, i32
  }
  func.func @transform_2(%arg0: i32, %arg1: i32, %arg2: i32) -> (i32, i32) {
    %c0_i32 = arith.constant 0 : i32
    %c0_i32_0 = arith.constant 0 : i32
    %c0_i32_1 = arith.constant 0 : i32
    return %c0_i32, %c0_i32_0 : i32, i32
  }
  func.func @transform_3(%arg0: i32, %arg1: i32, %arg2: i32) -> (i32, i32) {
    %c0_i32 = arith.constant 0 : i32
    %c0_i32_0 = arith.constant 0 : i32
    %c0_i32_1 = arith.constant 0 : i32
    return %c0_i32, %c0_i32_0 : i32, i32
  }
  func.func @transform_4(%arg0: i32, %arg1: i32, %arg2: i32) -> (i32, i32) {
    %c0_i32 = arith.constant 0 : i32
    %c0_i32_0 = arith.constant 0 : i32
    %c0_i32_1 = arith.constant 0 : i32
    return %c0_i32, %c0_i32_0 : i32, i32
  }
  func.func @transform_5(%arg0: i32, %arg1: i32, %arg2: i32) -> (i32, i32, i32) {
    %c0_i32 = arith.constant 0 : i32
    %c0_i32_0 = arith.constant 0 : i32
    return %arg0, %c0_i32, %arg1 : i32, i32, i32
  }
}

</mosaic_0001>

<llo_original>
// kernel: tpu_custom_call.1
$region0: #{tpu_custom_call.1}
  #allocation0 [shape = 'u32[]', space=smem, size = 0x4, offset = 0x4, fixed_abs, tag = 'smem constant byte address 0x4 - core index']
  #allocation1 [shape = 'u32[72,128]{1,0:T(1,128)}', space=vmem, size = 0x9000, scoped, tag = 'internal scratch']
  #allocation2 [shape = 'f32[1,8,16]{2,1,0:T(8,128)}', space=vmem, size = 0x1000, scoped, tag = 'scratch operand']
  #allocation3 [shape = 'f32[1,1,8]{2,1,0:T(1,128)}', space=vmem, size = 0x200, scoped, tag = 'scratch operand']
  #allocation4 [shape = 'f32[1,1,8]{2,1,0:T(1,128)}', space=vmem, size = 0x200, scoped, tag = 'scratch operand']
  #allocation5 [shape = 'f32[1,16,8]{2,1,0:T(8,128)}', space=vmem, size = 0x2000, scoped, tag = 'scratch operand']
  %s0 = inlined_call_operand.vmem [shape: f32[2,8,64], index: 0, kind: input, shape index: {}]
  %s1 = inlined_call_operand.vmem [shape: f32[2,8,64], index: 1, kind: input, shape index: {}]
  %s2 = inlined_call_operand.vmem [shape: f32[64,16], index: 2, kind: input, shape index: {}]
  %s3 = inlined_call_operand.vmem [shape: f32[64,16], index: 3, kind: input, shape index: {}]
  %s4 = inlined_call_operand.vmem [shape: f32[64,16], index: 4, kind: input, shape index: {}]
  %s5 = inlined_call_operand.vmem [shape: f32[2,16,8], index: 5, kind: output, shape index: {}]
  %s6 = sld [smem:[#allocation0]]
  $region65: #{tpu_custom_call.1} parent=0
    _
  %s8 = ssub.s32 1, %s6
  %s9 = scalar_select 0, %s8, %s6
  loop: start=0, step=1, limit=4
  $region2: #{tpu_custom_call.1} parent=0 // loop_pre_header
    _
  $region3: #{tpu_custom_call.1} parent=0 // loop_header
    %s11 = sphi 0, %s15
    %p12 = scmp.ge.s32.totalorder %s11, 4
    %s18 = sphi 0, %s37
    %s19 = sphi 0, %s33
    %s20 = sphi 0, %s29
    %s21 = sphi 0, %s18
    %s22 = sphi 0, %s19
    %s23 = sphi 0, %s20
    %s24 = sphi 0, %s21
    %s25 = sphi 0, %s22
    %s26 = sphi 0, %s23
    %s42 = sphi 0, %s44
    %s45 = sphi 0, %s42
    %s46 = sphi 0, %s45
    %s62 = sphi 0, %s46
    %s70 = sphi 0, %s72
    %s73 = sphi 0, %s70
    %s74 = sphi 0, %s73
    %s90 = sphi 0, %s74
    %s94 = sphi 0, %s94
    %s96 = sphi 0, %s94
    %s97 = sphi 0, %s96
    %s111 = sphi 0, %s97
    %s115 = sphi 0, %s115
    %s117 = sphi 0, %s115
    %s118 = sphi 0, %s117
    %s132 = sphi 0, %s118
    %s136 = sphi 0, %s136
    %s138 = sphi 0, %s136
    %s139 = sphi 0, %s138
    %s153 = sphi 0, %s139
    %s161 = sphi 0, %s163
    %s164 = sphi 0, %s161
    %s165 = sphi 0, %s164
    %s181 = sphi 0, %s165
  $region4: #{tpu_custom_call.1} parent=0 // loop_header_branch
    %14 = sbr.rel (%p12) target = $region8
  $region5: #{tpu_custom_call.1} parent=0 // loop_body
    %s16 = ssub.s32 %s11, 1
    %s17 = ssub.s32 %s11, 2
    %s27 = sadd.s32 1, %s20
    %p28 = scmp.ge.s32.totalorder %s27, 1
    %s29 = scalar_select %p28, 0, %s27
    %s30 = sadd.s32 1, %s19
    %s31 = scalar_select %p28, %s30, %s19
    %p32 = scmp.ge.s32.totalorder %s31, 1
    %s33 = scalar_select %p32, 0, %s31
    %s34 = sadd.s32 1, %s18
    %s35 = scalar_select %p32, %s34, %s18
    %p36 = scmp.ge.s32.totalorder %s35, 2
    %s37 = scalar_select %p36, 0, %s35
    %s38 = ssub.s32 %s18, %s37
    %s39 = ssub.s32 %s19, %s33
    %s40 = sor.u32 %s38, %s39
    %p41 = scmp.eq.s32.totalorder %s40, 0
    %s43 = sadd.s32 %s42, 1
    %s44 = scalar_select %p41, %s42, %s43
    %p47 = pneg %p41
    %p48 = scmp.eq.s32.totalorder %s11, 1
    %p49 = por %p47, %p48
    %p50 = scmp.ne.s32.totalorder %s42, %s45
    %p51 = scmp.eq.s32.totalorder %s11, 0
    %p52 = por %p50, %p51
    %p53 = scmp.ne.s32.totalorder %s42, %s45
    %p54 = scmp.eq.s32.totalorder %s16, 1
    %p55 = por %p53, %p54
    %p56 = scmp.ne.s32.totalorder %s45, %s46
    %p57 = scmp.eq.s32.totalorder %s16, 0
    %p58 = por %p56, %p57
    %p59 = scmp.ne.s32.totalorder %s45, %s46
    %p60 = scmp.eq.s32.totalorder %s17, 1
    %p61 = por %p59, %p60
    %p63 = scmp.ne.s32.totalorder %s46, %s62
    %p64 = scmp.eq.s32.totalorder %s17, 0
    %p65 = por %p63, %p64
    %s66 = ssub.s32 %s18, %s37
    %s67 = ssub.s32 %s20, %s29
    %s68 = sor.u32 %s66, %s67
    %p69 = scmp.eq.s32.totalorder %s68, 0
    %s71 = sadd.s32 %s70, 1
    %s72 = scalar_select %p69, %s70, %s71
    %p75 = pneg %p69
    %p76 = scmp.eq.s32.totalorder %s11, 1
    %p77 = por %p75, %p76
    %p78 = scmp.ne.s32.totalorder %s70, %s73
    %p79 = scmp.eq.s32.totalorder %s11, 0
    %p80 = por %p78, %p79
    %p81 = scmp.ne.s32.totalorder %s70, %s73
    %p82 = scmp.eq.s32.totalorder %s16, 1
    %p83 = por %p81, %p82
    %p84 = scmp.ne.s32.totalorder %s73, %s74
    %p85 = scmp.eq.s32.totalorder %s16, 0
    %p86 = por %p84, %p85
    %p87 = scmp.ne.s32.totalorder %s73, %s74
    %p88 = scmp.eq.s32.totalorder %s17, 1
    %p89 = por %p87, %p88
    %p91 = scmp.ne.s32.totalorder %s74, %s90
    %p92 = scmp.eq.s32.totalorder %s17, 0
    %p93 = por %p91, %p92
    %s95 = sadd.s32 %s94, 1
    %p98 = scmp.eq.s32.totalorder %s11, 1
    %p99 = scmp.ne.s32.totalorder %s94, %s96
    %p100 = scmp.eq.s32.totalorder %s11, 0
    %p101 = por %p99, %p100
    %p102 = scmp.ne.s32.totalorder %s94, %s96
    %p103 = scmp.eq.s32.totalorder %s16, 1
    %p104 = por %p102, %p103
    %p105 = scmp.ne.s32.totalorder %s96, %s97
    %p106 = scmp.eq.s32.totalorder %s16, 0
    %p107 = por %p105, %p106
    %p108 = scmp.ne.s32.totalorder %s96, %s97
    %p109 = scmp.eq.s32.totalorder %s17, 1
    %p110 = por %p108, %p109
    %p112 = scmp.ne.s32.totalorder %s97, %s111
    %p113 = scmp.eq.s32.totalorder %s17, 0
    %p114 = por %p112, %p113
    %s116 = sadd.s32 %s115, 1
    %p119 = scmp.eq.s32.totalorder %s11, 1
    %p120 = scmp.ne.s32.totalorder %s115, %s117
    %p121 = scmp.eq.s32.totalorder %s11, 0
    %p122 = por %p120, %p121
    %p123 = scmp.ne.s32.totalorder %s115, %s117
    %p124 = scmp.eq.s32.totalorder %s16, 1
    %p125 = por %p123, %p124
    %p126 = scmp.ne.s32.totalorder %s117, %s118
    %p127 = scmp.eq.s32.totalorder %s16, 0
    %p128 = por %p126, %p127
    %p129 = scmp.ne.s32.totalorder %s117, %s118
    %p130 = scmp.eq.s32.totalorder %s17, 1
    %p131 = por %p129, %p130
    %p133 = scmp.ne.s32.totalorder %s118, %s132
    %p134 = scmp.eq.s32.totalorder %s17, 0
    %p135 = por %p133, %p134
    %s137 = sadd.s32 %s136, 1
    %p140 = scmp.eq.s32.totalorder %s11, 1
    %p141 = scmp.ne.s32.totalorder %s136, %s138
    %p142 = scmp.eq.s32.totalorder %s11, 0
    %p143 = por %p141, %p142
    %p144 = scmp.ne.s32.totalorder %s136, %s138
    %p145 = scmp.eq.s32.totalorder %s16, 1
    %p146 = por %p144, %p145
    %p147 = scmp.ne.s32.totalorder %s138, %s139
    %p148 = scmp.eq.s32.totalorder %s16, 0
    %p149 = por %p147, %p148
    %p150 = scmp.ne.s32.totalorder %s138, %s139
    %p151 = scmp.eq.s32.totalorder %s17, 1
    %p152 = por %p150, %p151
    %p154 = scmp.ne.s32.totalorder %s139, %s153
    %p155 = scmp.eq.s32.totalorder %s17, 0
    %p156 = por %p154, %p155
    %s157 = ssub.s32 %s18, %s37
    %s158 = ssub.s32 %s19, %s33
    %s159 = sor.u32 %s157, %s158
    %p160 = scmp.eq.s32.totalorder %s159, 0
    %s162 = sadd.s32 %s161, 1
    %s163 = scalar_select %p160, %s161, %s162
    %p166 = pneg %p160
    %p167 = scmp.eq.s32.totalorder %s11, 1
    %p168 = por %p166, %p167
    %p169 = scmp.ne.s32.totalorder %s161, %s164
    %p170 = scmp.eq.s32.totalorder %s11, 0
    %p171 = por %p169, %p170
    %p172 = scmp.ne.s32.totalorder %s161, %s164
    %p173 = scmp.eq.s32.totalorder %s16, 1
    %p174 = por %p172, %p173
    %p175 = scmp.ne.s32.totalorder %s164, %s165
    %p176 = scmp.eq.s32.totalorder %s16, 0
    %p177 = por %p175, %p176
    %p178 = scmp.ne.s32.totalorder %s164, %s165
    %p179 = scmp.eq.s32.totalorder %s17, 1
    %p180 = por %p178, %p179
    %p182 = scmp.ne.s32.totalorder %s165, %s181
    %p183 = scmp.eq.s32.totalorder %s17, 0
    %p184 = por %p182, %p183
    %p185 = scmp.le.s32.totalorder 1, %s11
    %p186 = scmp.lt.s32.totalorder %s11, 3
    %p187 = pnand %p185, %p186
    %p188 = pneg %p187
    // Predicated region
    $region9: #{tpu_custom_call.1} parent=5 // pred_check
      _
    $region10: #{tpu_custom_call.1} parent=5 // pred_check_branch
      %190 = sbr.rel (%p187) target = $region12
    $region11: #{tpu_custom_call.1} parent=5 // pred_region
      %s191 = ssub.s32 %s11, 1
      // Predicated region
      $region13: #{tpu_custom_call.1} parent=11 // pred_check
        %p192 = pneg %p107
      $region14: #{tpu_custom_call.1} parent=11 // pred_check_branch
        %194 = sbr.rel (%p192) target = $region16
      $region15: #{tpu_custom_call.1} parent=11 // pred_region
        _
      $region16: #{tpu_custom_call.1} parent=11 // pred_fallthru
        _
      // Predicated region
      $region17: #{tpu_custom_call.1} parent=11 // pred_check
        %p195 = pneg %p128
      $region18: #{tpu_custom_call.1} parent=11 // pred_check_branch
        %197 = sbr.rel (%p195) target = $region20
      $region19: #{tpu_custom_call.1} parent=11 // pred_region
        _
      $region20: #{tpu_custom_call.1} parent=11 // pred_fallthru
        _
      // Predicated region
      $region21: #{tpu_custom_call.1} parent=11 // pred_check
        %p198 = pneg %p149
      $region22: #{tpu_custom_call.1} parent=11 // pred_check_branch
        %200 = sbr.rel (%p198) target = $region24
      $region23: #{tpu_custom_call.1} parent=11 // pred_region
        _
      $region24: #{tpu_custom_call.1} parent=11 // pred_fallthru
        _
    $region12: #{tpu_custom_call.1} parent=5 // pred_fallthru
      _
    %p201 = scmp.lt.s32.totalorder %s11, 2
    // Predicated region
    $region25: #{tpu_custom_call.1} parent=5 // pred_check
      %p202 = pneg %p201
    $region26: #{tpu_custom_call.1} parent=5 // pred_check_branch
      %204 = sbr.rel (%p202) target = $region28
    $region27: #{tpu_custom_call.1} parent=5 // pred_region
      // Predicated region
      $region29: #{tpu_custom_call.1} parent=27 // pred_check
        %p205 = pneg %p52
      $region30: #{tpu_custom_call.1} parent=27 // pred_check_branch
        %207 = sbr.rel (%p205) target = $region32
      $region31: #{tpu_custom_call.1} parent=27 // pred_region
        %p208 = scmp.lt.s32.totalorder %s18, 1
        %s209 = scalar_select %p208, %s18, 1
        %p210 = scmp.lt.s32.totalorder %s19, 0
        %s211 = scalar_select %p210, %s19, 0
        %s212 = sadd.s32 %s211, %s209
        %s213 = smul.addr %s212, 8
        %s214 = scalar_lea.vmem %s0, %s213
      $region32: #{tpu_custom_call.1} parent=27 // pred_fallthru
        _
      // Predicated region
      $region33: #{tpu_custom_call.1} parent=27 // pred_check
        %p215 = pneg %p80
      $region34: #{tpu_custom_call.1} parent=27 // pred_check_branch
        %217 = sbr.rel (%p215) target = $region36
      $region35: #{tpu_custom_call.1} parent=27 // pred_region
        %p218 = scmp.lt.s32.totalorder %s18, 1
        %s219 = scalar_select %p218, %s18, 1
        %p220 = scmp.lt.s32.totalorder %s20, 0
        %s221 = scalar_select %p220, %s20, 0
        %s222 = sadd.s32 %s221, %s219
        %s223 = smul.addr %s222, 8
        %s224 = scalar_lea.vmem %s1, %s223
      $region36: #{tpu_custom_call.1} parent=27 // pred_fallthru
        _
    $region28: #{tpu_custom_call.1} parent=5 // pred_fallthru
      _
    %p225 = scmp.le.s32.totalorder 1, %s11
    %p226 = scmp.lt.s32.totalorder %s11, 3
    %p227 = pnand %p225, %p226
    %p228 = pneg %p227
    // Predicated region
    $region37: #{tpu_custom_call.1} parent=5 // pred_check
      _
    $region38: #{tpu_custom_call.1} parent=5 // pred_check_branch
      %230 = sbr.rel (%p227) target = $region40
    $region39: #{tpu_custom_call.1} parent=5 // pred_region
      %s231 = ssub.s32 %s11, 1
      %p232 = scmp.lt.s32.totalorder %s21, 1
      %s233 = scalar_select %p232, %s21, 1
      %p234 = scmp.lt.s32.totalorder %s22, 0
      %s235 = scalar_select %p234, %s22, 0
      %s236 = sadd.s32 %s235, %s233
      %s237 = smul.addr %s236, 8
      %s238 = scalar_lea.vmem %s0, %s237
      %p239 = pneg %p58
      %p240 = pneg %p55
      %p241 = scmp.lt.s32.totalorder %s21, 1
      %s242 = scalar_select %p241, %s21, 1
      %p243 = scmp.lt.s32.totalorder %s23, 0
      %s244 = scalar_select %p243, %s23, 0
      %s245 = sadd.s32 %s244, %s242
      %s246 = smul.addr %s245, 8
      %s247 = scalar_lea.vmem %s1, %s246
      %p248 = pneg %p86
      %p249 = pneg %p83
      %p250 = pneg %p107
      %p251 = pneg %p104
      %p252 = pneg %p128
      %p253 = pneg %p125
      %p254 = pneg %p149
      %p255 = pneg %p146
      %p256 = pneg %p177
      %p257 = pneg %p174
      %p258 = scmp.lt.s32.totalorder %s21, 1
      %s259 = scalar_select %p258, %s21, 1
      %p260 = scmp.lt.s32.totalorder %s22, 0
      %s261 = scalar_select %p260, %s22, 0
      %s262 = smul.addr %s259, 2
      %s263 = sadd.s32 %s261, %s262
      %s264 = smul.addr %s263, 8
      %s265 = scalar_lea.vmem %s5, %s264
      %p266 = scmp.lt.s32.totalorder %s21, 1
      %s267 = scalar_select %p266, %s21, 1
      %p268 = scmp.lt.s32.totalorder %s22, 0
      %s269 = scalar_select %p268, %s22, 0
      %s270 = sadd.s32 %s269, %s267
      %s271 = smul.addr %s270, 8
      %s272 = scalar_lea.vmem %s0, %s271
      %p273 = scmp.lt.s32.totalorder %s21, 1
      %s274 = scalar_select %p273, %s21, 1
      %p275 = scmp.lt.s32.totalorder %s23, 0
      %s276 = scalar_select %p275, %s23, 0
      %s277 = sadd.s32 %s276, %s274
      %s278 = smul.addr %s277, 8
      %s279 = scalar_lea.vmem %s1, %s278
      %p280 = scmp.lt.s32.totalorder %s21, 1
      %s281 = scalar_select %p280, %s21, 1
      %p282 = scmp.lt.s32.totalorder %s22, 0
      %s283 = scalar_select %p282, %s22, 0
      %s284 = smul.addr %s281, 2
      %s285 = sadd.s32 %s283, %s284
      %s286 = smul.addr %s285, 8
      %s287 = scalar_lea.vmem %s5, %s286
      %s288 = smul.u32 %s22, 8
      %s289 = smul.u32 %s23, 8
      %p290 = scmp.eq.s32.totalorder %s23, 0
      // Predicated region
      $region41: #{tpu_custom_call.1} parent=39 // pred_check
        %p291 = pneg %p290
      $region42: #{tpu_custom_call.1} parent=39 // pred_check_branch
        %293 = sbr.rel (%p291) target = $region44
      $region43: #{tpu_custom_call.1} parent=39 // pred_region
        %v294 = vld [vmem:[%s272] sm:$0xff]
        %v295 = vld [vmem:[%s2] sm:$0xff]
        %v296 = vld [vmem:[%s2 + $0x8] sm:$0xff]
        %v297 = vld [vmem:[%s2 + $0x10] sm:$0xff]
        %v298 = vld [vmem:[%s2 + $0x18] sm:$0xff]
        %v299 = vld [vmem:[%s2 + $0x20] sm:$0xff]
        %v300 = vld [vmem:[%s2 + $0x28] sm:$0xff]
        %v301 = vld [vmem:[%s2 + $0x30] sm:$0xff]
        %v302 = vld [vmem:[%s2 + $0x38] sm:$0xff]
        %vm303 = vcmask 523264
        %v305 = vsel %vm303, %v294, 0
        %307 = vmatpush.msra.mxu0 0.0
        %308 = vmatpush.msra.mxu0 0.0
        %309 = vmatpush.msra.mxu0 0.0
        %310 = vmatpush.msra.mxu0 0.0
        %311 = vmatpush.msra.mxu0 0.0
        %312 = vmatpush.msra.mxu0 0.0
        %313 = vmatpush.msra.mxu0 0.0
        %314 = vmatpush.msra.mxu0 0.0
        %315 = vmatpush.msra.mxu0 %v302
        %316 = vmatpush.msra.mxu0 %v301
        %317 = vmatpush.msra.mxu0 %v300
        %318 = vmatpush.msra.mxu0 %v299
        %319 = vmatpush.msra.mxu0 %v298
        %320 = vmatpush.msra.mxu0 %v297
        %321 = vmatpush.msra.mxu0 %v296
        %322 = vmatpush.msra.mxu0 %v295
        %323 = vmatmul.f32.gmra.mxu0 %v305
        %v324 = vpop.f32.mrf.mxu0
        %v325 = vadd.f32 0.0, %v324
        %326 = vdwg.mxu0
        %vm327 = vcmask 130048
        %328 = vst.msk [vmem:[#allocation2] sm:$0xff] %vm327, %v325
        %vm329 = vcmask 57344
        %330 = vst.msk [vmem:[#allocation3] sm:$0x1] %vm329, -inf
        %331 = vst.msk [vmem:[#allocation4] sm:$0x1] %vm329, 0.0
        %vm332 = vcmask 64512
        %333 = vst.msk [vmem:[#allocation5] sm:$0xff] %vm332, 0.0
        %334 = vst.msk [vmem:[#allocation5 + $0x8] sm:$0xff] %vm332, 0.0
      $region44: #{tpu_custom_call.1} parent=39 // pred_fallthru
        _
      %s335 = sadd.s32 %s288, 7
      %p336 = scmp.le.s32.totalorder %s289, %s335
      // Predicated region
      $region45: #{tpu_custom_call.1} parent=39 // pred_check
        %p337 = pneg %p336
      $region46: #{tpu_custom_call.1} parent=39 // pred_check_branch
        %339 = sbr.rel (%p337) target = $region48
      $region47: #{tpu_custom_call.1} parent=39 // pred_region
        %v340 = vld [vmem:[%s279] sm:$0xff]
        %v341 = vld [vmem:[%s3] sm:$0xff]
        %v342 = vld [vmem:[%s3 + $0x8] sm:$0xff]
        %v343 = vld [vmem:[%s3 + $0x10] sm:$0xff]
        %v344 = vld [vmem:[%s3 + $0x18] sm:$0xff]
        %v345 = vld [vmem:[%s3 + $0x20] sm:$0xff]
        %v346 = vld [vmem:[%s3 + $0x28] sm:$0xff]
        %v347 = vld [vmem:[%s3 + $0x30] sm:$0xff]
        %v348 = vld [vmem:[%s3 + $0x38] sm:$0xff]
        %vm349 = vcmask 523264
        %v351 = vsel %vm349, %v340, 0
        %353 = vmatpush.msra.mxu0 0.0
        %354 = vmatpush.msra.mxu0 0.0
        %355 = vmatpush.msra.mxu0 0.0
        %356 = vmatpush.msra.mxu0 0.0
        %357 = vmatpush.msra.mxu0 0.0
        %358 = vmatpush.msra.mxu0 0.0
        %359 = vmatpush.msra.mxu0 0.0
        %360 = vmatpush.msra.mxu0 0.0
        %361 = vmatpush.msra.mxu0 %v348
        %362 = vmatpush.msra.mxu0 %v347
        %363 = vmatpush.msra.mxu0 %v346
        %364 = vmatpush.msra.mxu0 %v345
        %365 = vmatpush.msra.mxu0 %v344
        %366 = vmatpush.msra.mxu0 %v343
        %367 = vmatpush.msra.mxu0 %v342
        %368 = vmatpush.msra.mxu0 %v341
        %369 = vmatmul.f32.gmra.mxu0 %v351
        %v370 = vpop.f32.mrf.mxu0
        %v371 = vadd.f32 0.0, %v370
        %372 = vdwg.mxu0
        %v373 = vld [vmem:[%s4] sm:$0xff]
        %v374 = vld [vmem:[%s4 + $0x8] sm:$0xff]
        %v375 = vld [vmem:[%s4 + $0x10] sm:$0xff]
        %v376 = vld [vmem:[%s4 + $0x18] sm:$0xff]
        %v377 = vld [vmem:[%s4 + $0x20] sm:$0xff]
        %v378 = vld [vmem:[%s4 + $0x28] sm:$0xff]
        %v379 = vld [vmem:[%s4 + $0x30] sm:$0xff]
        %v380 = vld [vmem:[%s4 + $0x38] sm:$0xff]
        %381 = vmatpush.msra.mxu0 0.0
        %382 = vmatpush.msra.mxu0 0.0
        %383 = vmatpush.msra.mxu0 0.0
        %384 = vmatpush.msra.mxu0 0.0
        %385 = vmatpush.msra.mxu0 0.0
        %386 = vmatpush.msra.mxu0 0.0
        %387 = vmatpush.msra.mxu0 0.0
        %388 = vmatpush.msra.mxu0 0.0
        %389 = vmatpush.msra.mxu0 %v380
        %390 = vmatpush.msra.mxu0 %v379
        %391 = vmatpush.msra.mxu0 %v378
        %392 = vmatpush.msra.mxu0 %v377
        %393 = vmatpush.msra.mxu0 %v376
        %394 = vmatpush.msra.mxu0 %v375
        %395 = vmatpush.msra.mxu0 %v374
        %396 = vmatpush.msra.mxu0 %v373
        %397 = vmatmul.f32.gmra.mxu0 %v351
        %v398 = vpop.f32.mrf.mxu0
        %v399 = vadd.f32 0.0, %v398
        %400 = vdwg.mxu0
        %v401 = vld [vmem:[#allocation2] sm:$0xff]
        %vm402 = vcmask 130048
        %v404 = vsel %vm402, %v371, 0
        %v407 = vsel %vm402, %v401, 0
        %409 = vmatpush.xpose.msra.mxu0 0.0
        %410 = vmatpush.xpose.msra.mxu0 0.0
        %411 = vmatpush.xpose.msra.mxu0 0.0
        %412 = vmatpush.xpose.msra.mxu0 0.0
        %413 = vmatpush.xpose.msra.mxu0 0.0
        %414 = vmatpush.xpose.msra.mxu0 0.0
        %415 = vmatpush.xpose.msra.mxu0 0.0
        %416 = vmatpush.xpose.msra.mxu0 0.0
        %417 = vmatpush.xpose.msra.mxu0 0.0
        %418 = vmatpush.xpose.msra.mxu0 0.0
        %419 = vmatpush.xpose.msra.mxu0 0.0
        %420 = vmatpush.xpose.msra.mxu0 0.0
        %421 = vmatpush.xpose.msra.mxu0 0.0
        %422 = vmatpush.xpose.msra.mxu0 0.0
        %423 = vmatpush.xpose.msra.mxu0 0.0
        %424 = vmatpush.xpose.msra.mxu0 %v407
        %425 = vmatmul.f32.gmra.mxu0 %v404
        %v426 = vpop.f32.mrf.mxu0
        %v427 = vadd.f32 0.0, %v426
        %428 = vdwg.mxu0
        %v429 = vlaneseq
        %v430 = vshrl.u32 %v429, 7
        %v431 = vstv %s289
        %v432 = vadd.s32 %v430, %v431
        %v433 = vlaneseq
        %v434 = vand.u32 %v433, 127
        %v435 = vstv %s288
        %v436 = vadd.s32 %v434, %v435
        %vm437 = vcmp.le.s32.totalorder %v432, %v436
        %v438 = vsel %vm437, %v427, -inf
        %v439 = vld [vmem:[#allocation3] sm:$0x1]
        %vm440 = vcmask 64512
        %v441 = vsel %vm440, %v438, -inf
        %v442 = vrot.slane %v441, 4
        %v443 = vmax.f32 %v441, %v442
        %v444 = vrot.slane %v443, 2
        %v445 = vmax.f32 %v443, %v444
        %v446 = vrot.slane %v445, 1
        %v447 = vmax.f32 %v445, %v446
        %v448 = vmax.f32 %v439, %v447
        %v449 = vsub.f32 %v439, %v448
        %v450 = vmul.f32 %v449, 1.442695
        %v451 = vpow.pop %v450
        %v453 = vperm.slane %v448, 0
        %v455 = vsub.f32 %v438, %v453
        %v456 = vmul.f32 %v455, 1.442695
        %v457 = vpow.pop %v456
        %v458 = vld [vmem:[#allocation4] sm:$0x1]
        %v459 = vmul.f32 %v451, %v458
        %v460 = vsel %vm440, %v457, 0.0
        %v461 = vrot.slane %v460, 4
        %v462 = vadd.f32 %v460, %v461
        %v463 = vrot.slane %v462, 2
        %v464 = vadd.f32 %v462, %v463
        %v465 = vrot.slane %v464, 1
        %v466 = vadd.f32 %v464, %v465
        %v467 = vadd.f32 %v459, %v466
        %vm468 = vcmask 57344
        %469 = vst.msk [vmem:[#allocation4] sm:$0x1] %vm468, %v467
        %v470 = vld [vmem:[#allocation5] sm:$0xff]
        %v471 = vld [vmem:[#allocation5 + $0x8] sm:$0xff]
        %v473 = vperm.slane %v451, 0
        %v475 = vmul.f32 %v473, %v470
        %v476 = vmul.f32 %v473, %v471
        %477 = vxpose.xlu0.b32.start [1/16] %v399, 128
        %478 = vxpose.xlu0.b32.cont [2/16] 0.0, 128
        %479 = vxpose.xlu0.b32.cont [3/16] 0.0, 128
        %480 = vxpose.xlu0.b32.cont [4/16] 0.0, 128
        %481 = vxpose.xlu0.b32.cont [5/16] 0.0, 128
        %482 = vxpose.xlu0.b32.cont [6/16] 0.0, 128
        %483 = vxpose.xlu0.b32.cont [7/16] 0.0, 128
        %484 = vxpose.xlu0.b32.cont [8/16] 0.0, 128
        %485 = vxpose.xlu0.b32.cont [9/16] 0.0, 128
        %486 = vxpose.xlu0.b32.cont [10/16] 0.0, 128
        %487 = vxpose.xlu0.b32.cont [11/16] 0.0, 128
        %488 = vxpose.xlu0.b32.cont [12/16] 0.0, 128
        %489 = vxpose.xlu0.b32.cont [13/16] 0.0, 128
        %490 = vxpose.xlu0.b32.cont [14/16] 0.0, 128
        %491 = vxpose.xlu0.b32.cont [15/16] 0.0, 128
        %492 = vxpose.xlu0.b32.end [16/16] 0.0, 128
        %v493 = vpop.trf.xlu0
        %v494 = vpop.trf.xlu0
        %v495 = vpop.trf.xlu0
        %v496 = vpop.trf.xlu0
        %v497 = vpop.trf.xlu0
        %v498 = vpop.trf.xlu0
        %v499 = vpop.trf.xlu0
        %v500 = vpop.trf.xlu0
        %v501 = vpop.trf.xlu0
        %v502 = vpop.trf.xlu0
        %v503 = vpop.trf.xlu0
        %v504 = vpop.trf.xlu0
        %v505 = vpop.trf.xlu0
        %v506 = vpop.trf.xlu0
        %v507 = vpop.trf.xlu0
        %v508 = vpop.trf.xlu0
        %v510 = vsel %vm440, %v493, 0
        %v513 = vsel %vm440, %v494, 0
        %515 = vmatpush.msra.mxu0 0.0
        %516 = vmatpush.msra.mxu0 0.0
        %517 = vmatpush.msra.mxu0 0.0
        %518 = vmatpush.msra.mxu0 0.0
        %519 = vmatpush.msra.mxu0 0.0
        %520 = vmatpush.msra.mxu0 0.0
        %521 = vmatpush.msra.mxu0 0.0
        %522 = vmatpush.msra.mxu0 0.0
        %523 = vmatpush.msra.mxu0 0.0
        %524 = vmatpush.msra.mxu0 0.0
        %525 = vmatpush.msra.mxu0 0.0
        %526 = vmatpush.msra.mxu0 0.0
        %527 = vmatpush.msra.mxu0 0.0
        %528 = vmatpush.msra.mxu0 0.0
        %529 = vmatpush.msra.mxu0 0.0
        %530 = vmatpush.msra.mxu0 %v457
        %531 = vmatmul.f32.gmra.mxu0 %v510
        %v532 = vpop.f32.mrf.mxu0
        %v533 = vadd.f32 0.0, %v532
        %534 = vmatmul.f32.gmra.mxu0 %v513
        %v535 = vpop.f32.mrf.mxu0
        %v536 = vadd.f32 0.0, %v535
        %537 = vdwg.mxu0
        %v538 = vadd.f32 %v475, %v533
        %v539 = vadd.f32 %v476, %v536
        %540 = vst.msk [vmem:[#allocation5] sm:$0xff] %vm440, %v538
        %541 = vst.msk [vmem:[#allocation5 + $0x8] sm:$0xff] %vm440, %v539
        %542 = vst.msk [vmem:[#allocation3] sm:$0x1] %vm468, %v448
      $region48: #{tpu_custom_call.1} parent=39 // pred_fallthru
        _
      // Predicated region
      $region49: #{tpu_custom_call.1} parent=39 // pred_check
        %p543 = pneg %p290
      $region50: #{tpu_custom_call.1} parent=39 // pred_check_branch
        %545 = sbr.rel (%p543) target = $region52
      $region51: #{tpu_custom_call.1} parent=39 // pred_region
        %v546 = vld [vmem:[#allocation4] sm:$0x1]
        %v547 = vrcp.pop %v546
        %v548 = vmul.f32 %v546, %v547
        %v549 = vsub.f32 1.0, %v548
        %v550 = vmul.f32 %v547, %v549
        %v551 = vadd.f32 %v547, %v550
        %vm552 = vweird.f32 %v546
        %vm553 = vweird.f32 %v547
        %vm554 = vmor %vm552, %vm553
        %v555 = vsel %vm554, %v547, %v551
        %v556 = vand.u32 2147483647, %v546
        %vm557 = vcmp.eq.f32.partialorder %v556, 8.507059e+37
        %v558 = vand.u32 %v546, 2147483648
        %v559 = vor.u32 1.1754944e-38, %v558
        %v560 = vsel %vm557, %v559, %v555
        %v561 = vld [vmem:[#allocation5] sm:$0xff]
        %v562 = vld [vmem:[#allocation5 + $0x8] sm:$0xff]
        %v564 = vperm.slane %v560, 0
        %v566 = vmul.f32 %v561, %v564
        %v567 = vmul.f32 %v562, %v564
        %vm568 = vcmask 64512
        %569 = vst.msk [vmem:[%s287] sm:$0xff] %vm568, %v566
        %570 = vst.msk [vmem:[%s287 + $0x8] sm:$0xff] %vm568, %v567
      $region52: #{tpu_custom_call.1} parent=39 // pred_fallthru
        _
      %p571 = scmp.lt.s32.totalorder %s21, 1
      %s572 = scalar_select %p571, %s21, 1
      %p573 = scmp.lt.s32.totalorder %s22, 0
      %s574 = scalar_select %p573, %s22, 0
      %s575 = smul.addr %s572, 2
      %s576 = sadd.s32 %s574, %s575
      %s577 = smul.addr %s576, 8
      %s578 = scalar_lea.vmem %s5, %s577
      // Predicated region
      $region53: #{tpu_custom_call.1} parent=39 // pred_check
        %p579 = pneg %p174
      $region54: #{tpu_custom_call.1} parent=39 // pred_check_branch
        %581 = sbr.rel (%p579) target = $region56
      $region55: #{tpu_custom_call.1} parent=39 // pred_region
        _
      $region56: #{tpu_custom_call.1} parent=39 // pred_fallthru
        _
    $region40: #{tpu_custom_call.1} parent=5 // pred_fallthru
      _
    %p582 = scmp.le.s32.totalorder 2, %s11
    // Predicated region
    $region57: #{tpu_custom_call.1} parent=5 // pred_check
      %p583 = pneg %p582
    $region58: #{tpu_custom_call.1} parent=5 // pred_check_branch
      %585 = sbr.rel (%p583) target = $region60
    $region59: #{tpu_custom_call.1} parent=5 // pred_region
      %s586 = ssub.s32 %s11, 2
      // Predicated region
      $region61: #{tpu_custom_call.1} parent=59 // pred_check
        %p587 = pneg %p180
      $region62: #{tpu_custom_call.1} parent=59 // pred_check_branch
        %589 = sbr.rel (%p587) target = $region64
      $region63: #{tpu_custom_call.1} parent=59 // pred_region
        %p590 = scmp.lt.s32.totalorder %s24, 1
        %s591 = scalar_select %p590, %s24, 1
        %p592 = scmp.lt.s32.totalorder %s25, 0
        %s593 = scalar_select %p592, %s25, 0
        %s594 = smul.addr %s591, 2
        %s595 = sadd.s32 %s593, %s594
        %s596 = smul.addr %s595, 8
        %s597 = scalar_lea.vmem %s5, %s596
      $region64: #{tpu_custom_call.1} parent=59 // pred_fallthru
        _
    $region60: #{tpu_custom_call.1} parent=5 // pred_fallthru
      _
  $region6: #{tpu_custom_call.1} parent=0 // loop_footer
    %s15 = sadd.s32 1, %s11
  $region7: #{tpu_custom_call.1} parent=0 // loop_footer_branch
    %10 = sbr.rel target = $region3
  $region8: #{tpu_custom_call.1} parent=0 // loop_exit
    _

</llo_original>
